<compile_context>
chip_gen: v7x
topology: tpu7x:2x2x1
jax: 0.10.0
libtpu: 0.0.40
codegen_flags: <defaults>
</compile_context>

<pallas_src>
import math
import functools

import jax
import jax.numpy as jnp
from jax.experimental import pallas as pl
from jax.experimental.pallas import tpu as pltpu

d_k = d_v = 64  # module globals (kept for parity with the PyTorch file)


# ---------------------------------------------------------------------------
# Kernels
# ---------------------------------------------------------------------------
def _sdpa_flash_kernel(q_ref, k_ref, v_ref, m_ref, ctx_ref,
                       m_scr, l_scr, acc_scr, *, scale):
    """Online-softmax (flash) kernel: grid = (group, q-tile, kv-tile)."""
    # q_ref:   (Ht, tq, Dk)   compute dtype
    # k_ref:   (Ht, tk, Dk)   compute dtype
    # v_ref:   (Ht, tk, Dv)   compute dtype
    # m_ref:   (Ht, tq, tk)   int8, nonzero => masked
    # ctx_ref: (1, tq, Ht*Dv) heads packed along lanes (lane-dense store)
    # scratch: m_scr/l_scr (Ht, tq, 1) f32, acc_scr (Ht, tq, Dv) f32
    kv = pl.program_id(2)

    @pl.when(kv == 0)
    def _():
        m_scr[...] = jnp.full_like(m_scr, -jnp.inf)
        l_scr[...] = jnp.zeros_like(l_scr)
        acc_scr[...] = jnp.zeros_like(acc_scr)

    # scale Q in f32 (exact for any head dim), matmul in the streaming dtype
    q = (q_ref[...].astype(jnp.float32) * jnp.float32(scale)).astype(q_ref.dtype)
    k = k_ref[...]
    v = v_ref[...]

    # scores[h, q, k] = sum_d q[h, q, d] * k[h, k, d]   (no materialized K^T)
    s = jax.lax.dot_general(
        q, k,
        dimension_numbers=(((2,), (2,)), ((0,), (0,))),
        preferred_element_type=jnp.float32,
    )  # (Ht, tq, tk) f32
    s = jnp.where(m_ref[...] != 0, jnp.float32(-1.0e9), s)

    # online softmax update (all f32 — v5e has no bf16 VPU/EUP path)
    m_prev = m_scr[...]
    m_new = jnp.maximum(m_prev, jnp.max(s, axis=-1, keepdims=True))
    alpha = jnp.exp(m_prev - m_new)
    p = jnp.exp(s - m_new)
    l_scr[...] = alpha * l_scr[...] + jnp.sum(p, axis=-1, keepdims=True)

    pv = jax.lax.dot_general(
        p.astype(v.dtype), v,
        dimension_numbers=(((2,), (1,)), ((0,), (0,))),
        preferred_element_type=jnp.float32,
    )  # (Ht, tq, Dv) f32
    acc_scr[...] = alpha * acc_scr[...] + pv
    m_scr[...] = m_new

    @pl.when(kv == pl.num_programs(2) - 1)
    def _():
        ht = acc_scr.shape[0]
        ctx = acc_scr[...] * pl.reciprocal(l_scr[...], approx=True)  # EUP slot
        # single lane-dense (tq, Ht*Dv) store instead of Ht half-vreg stores
        packed = jnp.concatenate([ctx[h] for h in range(ht)], axis=-1)
        ctx_ref[0] = packed.astype(ctx_ref.dtype)


def _sdpa_full_kernel(q_ref, k_ref, v_ref, m_ref, ctx_ref, attn_ref, *, scale):
    """Full-Lk kernel used when the attention matrix must be returned."""
    # q_ref:   (Ht, tq, Dk)    k_ref/v_ref: (Ht, Lk, Dk/Dv)    m_ref: (Ht, tq, Lk)
    # ctx_ref: (1, tq, Ht*Dv)  attn_ref: (Ht, tq, Lk)
    ht = q_ref.shape[0]

    q = (q_ref[...].astype(jnp.float32) * jnp.float32(scale)).astype(q_ref.dtype)
    k = k_ref[...]
    v = v_ref[...]

    s = jax.lax.dot_general(
        q, k,
        dimension_numbers=(((2,), (2,)), ((0,), (0,))),
        preferred_element_type=jnp.float32,
    )  # (Ht, tq, Lk) f32
    s = jnp.where(m_ref[...] != 0, jnp.float32(-1.0e9), s)

    mx = jnp.max(s, axis=-1, keepdims=True)
    e = jnp.exp(s - mx)
    denom = jnp.sum(e, axis=-1, keepdims=True)
    attn = e / denom  # exact normalization: returned weights sum to 1 (PyTorch parity)
    attn_ref[...] = attn.astype(attn_ref.dtype)

    ctx = jax.lax.dot_general(
        attn.astype(v.dtype), v,
        dimension_numbers=(((2,), (1,)), ((0,), (0,))),
        preferred_element_type=jnp.float32,
    )  # (Ht, tq, Dv) f32
    packed = jnp.concatenate([ctx[h] for h in range(ht)], axis=-1)
    ctx_ref[0] = packed.astype(ctx_ref.dtype)


# ---------------------------------------------------------------------------
# Generation-aware sizing helpers
# ---------------------------------------------------------------------------
@functools.lru_cache(maxsize=None)
def _vmem_capacity_bytes():
    try:
        info = pltpu.get_tpu_info()
        cap = getattr(info, "vmem_capacity_bytes", None)
        if cap:
            return int(cap)
    except Exception:
        pass
    return 64 * 1024 * 1024  # conservative (v7x-sized) fallback


def _round_up(x, m):
    return ((x + m - 1) // m) * m


def _choose_tile(L, cap, align):
    """Pick a tile along one axis. Returns (tile, padded_L)."""
    if L <= cap:
        return L, L                     # single full-extent tile (any alignment ok)
    t = cap - (cap % align)
    while t >= align:
        if L % t == 0:
            return t, L                 # aligned divisor of L, no padding needed
        t -= align
    # no aligned divisor <= cap: pad to a moderate aligned tile (waste <= 255 rows)
    t = 256 if cap >= 256 else align
    return t, _round_up(L, t)


def _per_head_bytes(tq, tk, Dk, Dv, itemsize, with_attn):
    b = 2 * itemsize * tq * Dk          # Q stream (double-buffered)
    b += 2 * itemsize * tk * Dk         # K stream
    b += 2 * itemsize * tk * Dv         # V stream
    b += 2 * 1 * tq * tk                # int8 mask stream
    b += 2 * itemsize * tq * Dv         # ctx output stream
    b += 4 * 3 * tq * tk                # f32 scores / exp / prob temporaries
    b += 4 * tq * (Dv + 2)              # f32 online-softmax accumulators
    if with_attn:
        b += 2 * itemsize * tq * tk     # attn output stream
    return b


def _choose_ht(BH, per_head, budget):
    ht = int(max(1, min(BH, budget // max(per_head, 1))))
    while ht > 1 and BH % ht:
        ht -= 1
    return ht


# ---------------------------------------------------------------------------
# Wrapper
# ---------------------------------------------------------------------------
@functools.partial(jax.jit, static_argnames=("return_attn", "compute_dtype"))
def scaled_dot_product_attention(Q, K, V, attn_mask, return_attn=True,
                                 compute_dtype=None):
    """
    Q: [B, H, len_q, d_k]   K: [B, H, len_k, d_k]   V: [B, H, len_k, d_v]
    attn_mask: [B, H, len_q, len_k]  (bool/int, nonzero => masked)
    Returns (context, attn) like the PyTorch module (attn omitted if
    return_attn=False).  compute_dtype=jnp.bfloat16 runs the matmuls on the
    bf16-native MXU path (f32 accumulation + f32 softmax kept).
    """
    B, H, Lq, Dk = Q.shape
    Lk = K.shape[2]
    Dv = V.shape[3]
    BH = B * H
    in_dtype = Q.dtype
    cdtype = jnp.dtype(compute_dtype) if compute_dtype is not None else jnp.dtype(in_dtype)
    itemsize = cdtype.itemsize
    # Module scales by sqrt(d_k); Dk == module global d_k (64) for this model,
    # and using the actual head dim is the correct generalization.
    scale = 1.0 / math.sqrt(Dk)

    # --- generation-aware VMEM budgets (v7x: 64 MiB, v5e/v6e: 128 MiB) ---------
    vmem_cap = _vmem_capacity_bytes()
    vmem_limit = int(min(vmem_cap // 2, 96 * 1024 * 1024))     # 32 MiB on v7x, 64 MiB on 128 MiB parts
    budget = int(vmem_limit * 0.55)
    big_part = vmem_cap >= 100 * 1024 * 1024
    tq_cap = 512 if big_part else 256
    tk_cap = 512

    # --- tiling / padding ------------------------------------------------------
    tq, Lq_p = _choose_tile(Lq, tq_cap, 8)
    if return_attn:
        tk, Lk_p = Lk, Lk               # attn output forces the full-Lk kernel
    else:
        tk, Lk_p = _choose_tile(Lk, tk_cap, 128)
    nq = Lq_p // tq
    nkv = Lk_p // tk

    per_head = _per_head_bytes(tq, tk, Dk, Dv, itemsize, with_attn=return_attn)
    Ht = _choose_ht(BH, per_head, budget)
    # ensure the "parallel" grid has >= 2 steps (megacore / v7x dual TensorCore)
    if BH >= 2 and (BH // Ht) * nq < 2:
        Ht = BH // 2
        while Ht > 1 and BH % Ht:
            Ht -= 1
    G = BH // Ht
    group_bytes = Ht * per_head
    if group_bytes > budget:
        # even a single head group overflows (e.g. very long Lk with attn):
        # raise the limit as far as is safe and let the compiler schedule it.
        vmem_limit = int(max(vmem_limit,
                             min(vmem_cap * 4 // 5, group_bytes + 8 * 1024 * 1024)))

    # --- flatten / cast / pad inputs -------------------------------------------
    qf = Q.reshape(BH, Lq, Dk).astype(cdtype)
    kf = K.reshape(BH, Lk, Dk).astype(cdtype)
    vf = V.reshape(BH, Lk, Dv).astype(cdtype)
    m8 = attn_mask.reshape(BH, Lq, Lk).astype(jnp.int8)   # 1-byte mask stream

    if Lq_p != Lq:
        qf = jnp.pad(qf, ((0, 0), (0, Lq_p - Lq), (0, 0)))
        m8 = jnp.pad(m8, ((0, 0), (0, Lq_p - Lq), (0, 0)))           # pad rows unmasked
    if Lk_p != Lk:
        kf = jnp.pad(kf, ((0, 0), (0, Lk_p - Lk), (0, 0)))
        vf = jnp.pad(vf, ((0, 0), (0, Lk_p - Lk), (0, 0)))
        m8 = jnp.pad(m8, ((0, 0), (0, 0), (0, Lk_p - Lk)), constant_values=1)  # pad keys masked

    # --- pallas calls ------------------------------------------------------------
    if return_attn:
        outs = pl.pallas_call(
            functools.partial(_sdpa_full_kernel, scale=scale),
            out_shape=(jax.ShapeDtypeStruct((G, Lq_p, Ht * Dv), in_dtype),   # packed ctx
                       jax.ShapeDtypeStruct((BH, Lq_p, Lk), in_dtype)),      # attn
            grid_spec=pltpu.PrefetchScalarGridSpec(
                num_scalar_prefetch=0,
                grid=(G, nq),   # qi innermost -> K/V blocks reused across Lq tiles
                in_specs=[
                    pl.BlockSpec((Ht, tq, Dk), lambda g, qi: (g, qi, 0)),  # Q
                    pl.BlockSpec((Ht, Lk, Dk), lambda g, qi: (g, 0, 0)),   # K (full)
                    pl.BlockSpec((Ht, Lk, Dv), lambda g, qi: (g, 0, 0)),   # V (full)
                    pl.BlockSpec((Ht, tq, Lk), lambda g, qi: (g, qi, 0)),  # mask int8
                ],
                out_specs=[
                    pl.BlockSpec((1, tq, Ht * Dv), lambda g, qi: (g, qi, 0)),
                    pl.BlockSpec((Ht, tq, Lk), lambda g, qi: (g, qi, 0)),
                ],
            ),
            compiler_params=pltpu.CompilerParams(
                dimension_semantics=("parallel", "parallel"),
                vmem_limit_bytes=vmem_limit,
            ),
        )(qf, kf, vf, m8)
        ctx_packed, attn_flat = outs
    else:
        ctx_packed = pl.pallas_call(
            functools.partial(_sdpa_flash_kernel, scale=scale),
            out_shape=jax.ShapeDtypeStruct((G, Lq_p, Ht * Dv), in_dtype),
            grid_spec=pltpu.PrefetchScalarGridSpec(
                num_scalar_prefetch=0,
                grid=(G, nq, nkv),
                in_specs=[
                    pl.BlockSpec((Ht, tq, Dk), lambda g, qi, kv: (g, qi, 0)),  # Q
                    pl.BlockSpec((Ht, tk, Dk), lambda g, qi, kv: (g, kv, 0)),  # K tile
                    pl.BlockSpec((Ht, tk, Dv), lambda g, qi, kv: (g, kv, 0)),  # V tile
                    pl.BlockSpec((Ht, tq, tk), lambda g, qi, kv: (g, qi, kv)), # mask tile
                ],
                out_specs=pl.BlockSpec((1, tq, Ht * Dv), lambda g, qi, kv: (g, qi, 0)),
                scratch_shapes=[
                    pltpu.VMEM((Ht, tq, 1), jnp.float32),   # running max
                    pltpu.VMEM((Ht, tq, 1), jnp.float32),   # running denom
                    pltpu.VMEM((Ht, tq, Dv), jnp.float32),  # ctx accumulator
                ],
            ),
            compiler_params=pltpu.CompilerParams(
                dimension_semantics=("parallel", "parallel", "arbitrary"),
                vmem_limit_bytes=vmem_limit,
            ),
        )(qf, kf, vf, m8)

    # Un-pack the lane-dense ctx: (G, Lq_p, Ht*Dv) -> (B, H, Lq, Dv). Layout only.
    ctx = ctx_packed.reshape(G, Lq_p, Ht, Dv)
    ctx = jnp.transpose(ctx, (0, 2, 1, 3)).reshape(B, H, Lq_p, Dv)
    if Lq_p != Lq:
        ctx = ctx[:, :, :Lq, :]

    if return_attn:
        attn = attn_flat.reshape(B, H, Lq_p, Lk)
        if Lq_p != Lq:
            attn = attn[:, :, :Lq, :]
        return ctx, attn
    return ctx


# ---------------------------------------------------------------------------
# Pure-JAX reference + test
# ---------------------------------------------------------------------------
def _reference(Q, K, V, attn_mask):
    Dk = Q.shape[-1]
    scores = jnp.einsum(
        "bhqd,bhkd->bhqk", Q.astype(jnp.float32), K.astype(jnp.float32)
    ) / jnp.sqrt(jnp.float32(Dk))
    scores = jnp.where(attn_mask, jnp.float32(-1.0e9), scores)
    attn = jax.nn.softmax(scores, axis=-1)
    context = jnp.einsum("bhqk,bhkd->bhqd", attn, V.astype(jnp.float32))
    return context, attn


if __name__ == "__main__":
    key = jax.random.PRNGKey(0)

    # ------- test 1: small module-sized shapes, both outputs (PyTorch parity) ----
    kq, kk, kv, km, key = jax.random.split(key, 5)
    B, H, L = 2, 4, 8  # batch=2, heads=4, seq=8; d_k=d_v=64 fixed by the module
    Q = jax.random.normal(kq, (B, H, L, d_k), dtype=jnp.float32)
    K = jax.random.normal(kk, (B, H, L, d_k), dtype=jnp.float32)
    V = jax.random.normal(kv, (B, H, L, d_v), dtype=jnp.float32)
    attn_mask = jax.random.bernoulli(km, p=0.25, shape=(B, H, L, L))
    attn_mask = attn_mask.at[..., 0].set(False)  # avoid fully-masked (degenerate) rows

    ctx, attn = scaled_dot_product_attention(Q, K, V, attn_mask)
    jax.block_until_ready((ctx, attn))
    ctx_ref, attn_ref = _reference(Q, K, V, attn_mask)
    assert bool(jnp.allclose(ctx, ctx_ref, atol=2e-3, rtol=2e-3))
    assert bool(jnp.allclose(attn, attn_ref, atol=2e-3, rtol=2e-3))

    ctx_only = scaled_dot_product_attention(Q, K, V, attn_mask, return_attn=False)
    jax.block_until_ready(ctx_only)
    assert bool(jnp.allclose(ctx_only, ctx_ref, atol=2e-3, rtol=2e-3))

    # ------- test 2: context-only flash path with multiple Lk tiles --------------
    kq2, kk2, kv2, km2, key = jax.random.split(key, 5)
    B2, H2, Lq2, Lk2 = 1, 2, 160, 640
    Q2 = jax.random.normal(kq2, (B2, H2, Lq2, d_k), dtype=jnp.float32)
    K2 = jax.random.normal(kk2, (B2, H2, Lk2, d_k), dtype=jnp.float32)
    V2 = jax.random.normal(kv2, (B2, H2, Lk2, d_v), dtype=jnp.float32)
    mask2 = jax.random.bernoulli(km2, p=0.25, shape=(B2, H2, Lq2, Lk2))
    mask2 = mask2.at[..., 0].set(False)

    ctx2 = scaled_dot_product_attention(Q2, K2, V2, mask2, return_attn=False)
    jax.block_until_ready(ctx2)
    ctx2_ref, _ = _reference(Q2, K2, V2, mask2)
    assert bool(jnp.allclose(ctx2, ctx2_ref, atol=2e-3, rtol=2e-3))

    # ------- test 3: bf16 compute path (documented precision trade-off) ----------
    ctx3 = scaled_dot_product_attention(Q2, K2, V2, mask2, return_attn=False,
                                        compute_dtype=jnp.bfloat16)
    jax.block_until_ready(ctx3)
    assert bool(jnp.allclose(ctx3, ctx2_ref, atol=5e-2, rtol=5e-2))

    print("KERNEL_OK")
</pallas_src>

<mosaic_0001>
module attributes {stable_mosaic.version = 11 : i64} {
  func.func @_sdpa_full_kernel(%arg0: i32, %arg1: i32, %arg2: memref<4x8x64xf32, #tpu.memory_space<vmem>>, %arg3: memref<4x8x64xf32, #tpu.memory_space<vmem>>, %arg4: memref<4x8x64xf32, #tpu.memory_space<vmem>>, %arg5: memref<4x8x8xi8, #tpu.memory_space<vmem>>, %arg6: memref<1x8x256xf32, #tpu.memory_space<vmem>>, %arg7: memref<4x8x8xf32, #tpu.memory_space<vmem>>) attributes {dimension_semantics = [#tpu.dimension_semantics<parallel>, #tpu.dimension_semantics<parallel>], iteration_bounds = array<i64: 2, 1>, scalar_prefetch = 0 : i64, scratch_operands = 0 : i64, tpu.core_type = #tpu.core_type<tc>, window_params = [{transform_indices = @transform_0, window_bounds = array<i64: 4, 8, 64>}, {transform_indices = @transform_1, window_bounds = array<i64: 4, 8, 64>}, {transform_indices = @transform_2, window_bounds = array<i64: 4, 8, 64>}, {transform_indices = @transform_3, window_bounds = array<i64: 4, 8, 8>}, {transform_indices = @transform_4, window_bounds = array<i64: 1, 8, 256>}, {transform_indices = @transform_5, window_bounds = array<i64: 4, 8, 8>}]} {
    %c0 = arith.constant 0 : index
    %c0_0 = arith.constant 0 : index
    %c0_1 = arith.constant 0 : index
    %0 = vector.load %arg2[%c0, %c0_0, %c0_1] : memref<4x8x64xf32, #tpu.memory_space<vmem>>, vector<4x8x64xf32>
    %cst = arith.constant 1.250000e-01 : f32
    %1 = vector.broadcast %cst : f32 to vector<4x8x64xf32>
    %2 = arith.mulf %0, %1 : vector<4x8x64xf32>
    %c0_2 = arith.constant 0 : index
    %c0_3 = arith.constant 0 : index
    %c0_4 = arith.constant 0 : index
    %3 = vector.load %arg3[%c0_2, %c0_3, %c0_4] : memref<4x8x64xf32, #tpu.memory_space<vmem>>, vector<4x8x64xf32>
    %c0_5 = arith.constant 0 : index
    %c0_6 = arith.constant 0 : index
    %c0_7 = arith.constant 0 : index
    %4 = vector.load %arg4[%c0_5, %c0_6, %c0_7] : memref<4x8x64xf32, #tpu.memory_space<vmem>>, vector<4x8x64xf32>
    %cst_8 = arith.constant dense<0.000000e+00> : vector<4x8x8xf32>
    %5 = tpu.matmul %2, %3, %cst_8 {dimension_numbers = #tpu.dot_dimension_numbers<[2], [2], [1], [1], [0, 0, 0, 1, 1, 1], [0], [0]>} : vector<4x8x64xf32>, vector<4x8x64xf32>, vector<4x8x8xf32> -> vector<4x8x8xf32>
    %c0_9 = arith.constant 0 : index
    %c0_10 = arith.constant 0 : index
    %c0_11 = arith.constant 0 : index
    %6 = vector.load %arg5[%c0_9, %c0_10, %c0_11] : memref<4x8x8xi8, #tpu.memory_space<vmem>>, vector<4x8x8xi8>
    %c0_i8 = arith.constant 0 : i8
    %7 = vector.broadcast %c0_i8 : i8 to vector<4x8x8xi8>
    %8 = arith.cmpi ne, %6, %7 : vector<4x8x8xi8>
    %cst_12 = arith.constant -1.000000e+09 : f32
    %9 = vector.broadcast %cst_12 : f32 to vector<4x8x8xf32>
    %10 = arith.select %8, %9, %5 : vector<4x8x8xi1>, vector<4x8x8xf32>
    %cst_13 = arith.constant dense<0xFF800000> : vector<4x8xf32>
    %11 = vector.multi_reduction <maximumf>, %10, %cst_13 [2] : vector<4x8x8xf32> to vector<4x8xf32>
    %12 = vector.shape_cast %11 : vector<4x8xf32> to vector<4x8x1xf32>
    %13 = vector.broadcast %12 : vector<4x8x1xf32> to vector<4x8x8xf32>
    %14 = arith.subf %10, %13 : vector<4x8x8xf32>
    %15 = math.exp %14 : vector<4x8x8xf32>
    %cst_14 = arith.constant dense<0.000000e+00> : vector<4x8xf32>
    %16 = vector.multi_reduction <add>, %15, %cst_14 [2] : vector<4x8x8xf32> to vector<4x8xf32>
    %17 = vector.shape_cast %16 : vector<4x8xf32> to vector<4x8x1xf32>
    %18 = vector.broadcast %17 : vector<4x8x1xf32> to vector<4x8x8xf32>
    %19 = arith.divf %15, %18 : vector<4x8x8xf32>
    %c0_15 = arith.constant 0 : index
    %c0_16 = arith.constant 0 : index
    %c0_17 = arith.constant 0 : index
    %20 = vector.load %arg7[%c0_15, %c0_16, %c0_17] : memref<4x8x8xf32, #tpu.memory_space<vmem>>, vector<4x8x8xf32>
    tpu.vector_store %arg7[%c0_15, %c0_16, %c0_17], %19 {strides = array<i32>} : memref<4x8x8xf32, #tpu.memory_space<vmem>>, vector<4x8x8xf32>,
    %cst_18 = arith.constant dense<0.000000e+00> : vector<4x8x64xf32>
    %21 = tpu.matmul %19, %4, %cst_18 {dimension_numbers = #tpu.dot_dimension_numbers<[2], [1], [1], [2], [0, 0, 0, 1, 1, 2], [0], [0]>} : vector<4x8x8xf32>, vector<4x8x64xf32>, vector<4x8x64xf32> -> vector<4x8x64xf32>
    %22 = vector.extract_strided_slice %21 {offsets = [0, 0, 0], sizes = [1, 8, 64], strides = [1, 1, 1]} : vector<4x8x64xf32> to vector<1x8x64xf32>
    %23 = vector.shape_cast %22 : vector<1x8x64xf32> to vector<8x64xf32>
    %24 = vector.extract_strided_slice %21 {offsets = [1, 0, 0], sizes = [1, 8, 64], strides = [1, 1, 1]} : vector<4x8x64xf32> to vector<1x8x64xf32>
    %25 = vector.shape_cast %24 : vector<1x8x64xf32> to vector<8x64xf32>
    %26 = vector.extract_strided_slice %21 {offsets = [2, 0, 0], sizes = [1, 8, 64], strides = [1, 1, 1]} : vector<4x8x64xf32> to vector<1x8x64xf32>
    %27 = vector.shape_cast %26 : vector<1x8x64xf32> to vector<8x64xf32>
    %28 = vector.extract_strided_slice %21 {offsets = [3, 0, 0], sizes = [1, 8, 64], strides = [1, 1, 1]} : vector<4x8x64xf32> to vector<1x8x64xf32>
    %29 = vector.shape_cast %28 : vector<1x8x64xf32> to vector<8x64xf32>
    %30 = tpu.concatenate %23, %25, %27, %29 in 1 : vector<8x64xf32>, vector<8x64xf32>, vector<8x64xf32>, vector<8x64xf32> -> vector<8x256xf32>
    %c0_19 = arith.constant 0 : index
    %c0_20 = arith.constant 0 : index
    %c0_21 = arith.constant 0 : index
    %31 = vector.load %arg6[%c0_19, %c0_20, %c0_21] : memref<1x8x256xf32, #tpu.memory_space<vmem>>, vector<1x8x256xf32>
    %32 = vector.shape_cast %31 : vector<1x8x256xf32> to vector<8x256xf32>
    %33 = vector.shape_cast %30 : vector<8x256xf32> to vector<1x8x256xf32>
    tpu.vector_store %arg6[%c0_19, %c0_20, %c0_21], %33 {strides = array<i32>} : memref<1x8x256xf32, #tpu.memory_space<vmem>>, vector<1x8x256xf32>,
    return
  }
  func.func @transform_0(%arg0: i32, %arg1: i32) -> (i32, i32, i32) {
    %c0_i32 = arith.constant 0 : i32
    %c0_i32_0 = arith.constant 0 : i32
    return %arg0, %arg1, %c0_i32 : i32, i32, i32
  }
  func.func @transform_1(%arg0: i32, %arg1: i32) -> (i32, i32, i32) {
    %c0_i32 = arith.constant 0 : i32
    %c0_i32_0 = arith.constant 0 : i32
    %c0_i32_1 = arith.constant 0 : i32
    return %arg0, %c0_i32, %c0_i32_0 : i32, i32, i32
  }
  func.func @transform_2(%arg0: i32, %arg1: i32) -> (i32, i32, i32) {
    %c0_i32 = arith.constant 0 : i32
    %c0_i32_0 = arith.constant 0 : i32
    %c0_i32_1 = arith.constant 0 : i32
    return %arg0, %c0_i32, %c0_i32_0 : i32, i32, i32
  }
  func.func @transform_3(%arg0: i32, %arg1: i32) -> (i32, i32, i32) {
    %c0_i32 = arith.constant 0 : i32
    %c0_i32_0 = arith.constant 0 : i32
    return %arg0, %arg1, %c0_i32 : i32, i32, i32
  }
  func.func @transform_4(%arg0: i32, %arg1: i32) -> (i32, i32, i32) {
    %c0_i32 = arith.constant 0 : i32
    %c0_i32_0 = arith.constant 0 : i32
    return %arg0, %arg1, %c0_i32 : i32, i32, i32
  }
  func.func @transform_5(%arg0: i32, %arg1: i32) -> (i32, i32, i32) {
    %c0_i32 = arith.constant 0 : i32
    %c0_i32_0 = arith.constant 0 : i32
    return %arg0, %arg1, %c0_i32 : i32, i32, i32
  }
}

</mosaic_0001>

<llo_original>
// kernel: scaled_dot_product_attention.1
$region0: #{scaled_dot_product_attention.1}
  #allocation0 [shape = 'u32[]', space=smem, size = 0x4, offset = 0x4, fixed_abs, tag = 'smem constant byte address 0x4 - core index']
  #allocation1 [shape = 'u32[144,128]{1,0:T(1,128)}', space=vmem, size = 0x12000, scoped, tag = 'internal scratch']
  %s0 = inlined_call_operand.hbm [shape: f32[8,8,64], index: 0, kind: input, shape index: {}]
  %s1 = inlined_call_operand.hbm [shape: f32[8,8,64], index: 1, kind: input, shape index: {}]
  %s2 = inlined_call_operand.hbm [shape: f32[8,8,64], index: 2, kind: input, shape index: {}]
  %s3 = inlined_call_operand.vmem [shape: s8[8,8,8], index: 3, kind: input, shape index: {}]
  %s4 = inlined_call_operand.vmem [shape: f32[2,8,256], index: 4, kind: output, shape index: {0}]
  %s5 = inlined_call_operand.hbm [shape: f32[8,8,8], index: 5, kind: output, shape index: {1}]
  %6 = xla_tuple %s4, %s5
  %s7 = sld [smem:[#allocation0]]
  $region69: #{scaled_dot_product_attention.1} parent=0
    _
  %s9 = ssub.s32 1, %s7
  %s10 = scalar_select 0, %s9, %s7
  $region1: #{scaled_dot_product_attention.1} parent=0
    #allocation2 [shape = 'u8[32768]{0}', space=vmem, size = 0x8000, scoped, tag = 'input window, operand 0']
    #allocation3 [shape = 's32[2]{0}', space=sflag, size = 0x8, scoped, tag = 'scoped memory for scaled_dot_product_attention.1']
    #allocation4 [shape = 's32[2]{0}', space=sflag, size = 0x8, scoped, tag = 'scoped memory for scaled_dot_product_attention.1']
    #allocation5 [shape = 'u8[32768]{0}', space=vmem, size = 0x8000, scoped, tag = 'input window, operand 1']
    #allocation6 [shape = 's32[2]{0}', space=sflag, size = 0x8, scoped, tag = 'scoped memory for scaled_dot_product_attention.1']
    #allocation7 [shape = 'u8[32768]{0}', space=vmem, size = 0x8000, scoped, tag = 'input window, operand 2']
    #allocation8 [shape = 'u8[32768]{0}', space=vmem, size = 0x8000, scoped, tag = 'output window, operand 1']
    %11 = vsyncpa [#allocation3], 0
    %s12 = scalar_lea.sflag [#allocation3], 1
    %13 = vsyncpa %s12, 0
    %14 = vsyncpa [#allocation6], 0
    %s15 = scalar_lea.sflag [#allocation6], 1
    %16 = vsyncpa %s15, 0
    %17 = vsyncpa [#allocation4], 0
    %s18 = scalar_lea.sflag [#allocation4], 1
    %19 = vsyncpa %s18, 0
    loop: start=0, step=1, limit=4
    $region2: #{scaled_dot_product_attention.1} parent=1 // loop_pre_header
      _
    $region3: #{scaled_dot_product_attention.1} parent=1 // loop_header
      %s21 = sphi 0, %s25
      %p22 = scmp.ge.s32.totalorder %s21, 4
      %s28 = sphi 0, %s40
      %s29 = sphi 0, %s36
      %s30 = sphi 0, %s28
      %s31 = sphi 0, %s29
      %s32 = sphi 0, %s30
      %s33 = sphi 0, %s31
      %s45 = sphi 0, %s47
      %s48 = sphi 0, %s45
      %s49 = sphi 0, %s48
      %s65 = sphi 0, %s49
      %s71 = sphi 0, %s73
      %s74 = sphi 0, %s71
      %s75 = sphi 0, %s74
      %s91 = sphi 0, %s75
      %s97 = sphi 0, %s99
      %s100 = sphi 0, %s97
      %s101 = sphi 0, %s100
      %s117 = sphi 0, %s101
      %s125 = sphi 0, %s127
      %s128 = sphi 0, %s125
      %s129 = sphi 0, %s128
      %s145 = sphi 0, %s129
      %s153 = sphi 0, %s155
      %s156 = sphi 0, %s153
      %s157 = sphi 0, %s156
      %s173 = sphi 0, %s157
      %s181 = sphi 0, %s183
      %s184 = sphi 0, %s181
      %s185 = sphi 0, %s184
      %s201 = sphi 0, %s185
    $region4: #{scaled_dot_product_attention.1} parent=1 // loop_header_branch
      %24 = sbr.rel (%p22) target = $region8
    $region5: #{scaled_dot_product_attention.1} parent=1 // loop_body
      %s26 = ssub.s32 %s21, 1
      %s27 = ssub.s32 %s21, 2
      %s34 = sadd.s32 1, %s29
      %p35 = scmp.ge.s32.totalorder %s34, 1
      %s36 = scalar_select %p35, 0, %s34
      %s37 = sadd.s32 1, %s28
      %s38 = scalar_select %p35, %s37, %s28
      %p39 = scmp.ge.s32.totalorder %s38, 2
      %s40 = scalar_select %p39, 0, %s38
      %s41 = ssub.s32 %s28, %s40
      %s42 = ssub.s32 %s29, %s36
      %s43 = sor.u32 %s41, %s42
      %p44 = scmp.eq.s32.totalorder %s43, 0
      %s46 = sadd.s32 %s45, 1
      %s47 = scalar_select %p44, %s45, %s46
      %p50 = pneg %p44
      %p51 = scmp.eq.s32.totalorder %s21, 1
      %p52 = por %p50, %p51
      %p53 = scmp.ne.s32.totalorder %s45, %s48
      %p54 = scmp.eq.s32.totalorder %s21, 0
      %p55 = por %p53, %p54
      %p56 = scmp.ne.s32.totalorder %s45, %s48
      %p57 = scmp.eq.s32.totalorder %s26, 1
      %p58 = por %p56, %p57
      %p59 = scmp.ne.s32.totalorder %s48, %s49
      %p60 = scmp.eq.s32.totalorder %s26, 0
      %p61 = por %p59, %p60
      %p62 = scmp.ne.s32.totalorder %s48, %s49
      %p63 = scmp.eq.s32.totalorder %s27, 1
      %p64 = por %p62, %p63
      %p66 = scmp.ne.s32.totalorder %s49, %s65
      %p67 = scmp.eq.s32.totalorder %s27, 0
      %p68 = por %p66, %p67
      %s69 = ssub.s32 %s28, %s40
      %p70 = scmp.eq.s32.totalorder %s69, 0
      %s72 = sadd.s32 %s71, 1
      %s73 = scalar_select %p70, %s71, %s72
      %p76 = pneg %p70
      %p77 = scmp.eq.s32.totalorder %s21, 1
      %p78 = por %p76, %p77
      %p79 = scmp.ne.s32.totalorder %s71, %s74
      %p80 = scmp.eq.s32.totalorder %s21, 0
      %p81 = por %p79, %p80
      %p82 = scmp.ne.s32.totalorder %s71, %s74
      %p83 = scmp.eq.s32.totalorder %s26, 1
      %p84 = por %p82, %p83
      %p85 = scmp.ne.s32.totalorder %s74, %s75
      %p86 = scmp.eq.s32.totalorder %s26, 0
      %p87 = por %p85, %p86
      %p88 = scmp.ne.s32.totalorder %s74, %s75
      %p89 = scmp.eq.s32.totalorder %s27, 1
      %p90 = por %p88, %p89
      %p92 = scmp.ne.s32.totalorder %s75, %s91
      %p93 = scmp.eq.s32.totalorder %s27, 0
      %p94 = por %p92, %p93
      %s95 = ssub.s32 %s28, %s40
      %p96 = scmp.eq.s32.totalorder %s95, 0
      %s98 = sadd.s32 %s97, 1
      %s99 = scalar_select %p96, %s97, %s98
      %p102 = pneg %p96
      %p103 = scmp.eq.s32.totalorder %s21, 1
      %p104 = por %p102, %p103
      %p105 = scmp.ne.s32.totalorder %s97, %s100
      %p106 = scmp.eq.s32.totalorder %s21, 0
      %p107 = por %p105, %p106
      %p108 = scmp.ne.s32.totalorder %s97, %s100
      %p109 = scmp.eq.s32.totalorder %s26, 1
      %p110 = por %p108, %p109
      %p111 = scmp.ne.s32.totalorder %s100, %s101
      %p112 = scmp.eq.s32.totalorder %s26, 0
      %p113 = por %p111, %p112
      %p114 = scmp.ne.s32.totalorder %s100, %s101
      %p115 = scmp.eq.s32.totalorder %s27, 1
      %p116 = por %p114, %p115
      %p118 = scmp.ne.s32.totalorder %s101, %s117
      %p119 = scmp.eq.s32.totalorder %s27, 0
      %p120 = por %p118, %p119
      %s121 = ssub.s32 %s28, %s40
      %s122 = ssub.s32 %s29, %s36
      %s123 = sor.u32 %s121, %s122
      %p124 = scmp.eq.s32.totalorder %s123, 0
      %s126 = sadd.s32 %s125, 1
      %s127 = scalar_select %p124, %s125, %s126
      %p130 = pneg %p124
      %p131 = scmp.eq.s32.totalorder %s21, 1
      %p132 = por %p130, %p131
      %p133 = scmp.ne.s32.totalorder %s125, %s128
      %p134 = scmp.eq.s32.totalorder %s21, 0
      %p135 = por %p133, %p134
      %p136 = scmp.ne.s32.totalorder %s125, %s128
      %p137 = scmp.eq.s32.totalorder %s26, 1
      %p138 = por %p136, %p137
      %p139 = scmp.ne.s32.totalorder %s128, %s129
      %p140 = scmp.eq.s32.totalorder %s26, 0
      %p141 = por %p139, %p140
      %p142 = scmp.ne.s32.totalorder %s128, %s129
      %p143 = scmp.eq.s32.totalorder %s27, 1
      %p144 = por %p142, %p143
      %p146 = scmp.ne.s32.totalorder %s129, %s145
      %p147 = scmp.eq.s32.totalorder %s27, 0
      %p148 = por %p146, %p147
      %s149 = ssub.s32 %s28, %s40
      %s150 = ssub.s32 %s29, %s36
      %s151 = sor.u32 %s149, %s150
      %p152 = scmp.eq.s32.totalorder %s151, 0
      %s154 = sadd.s32 %s153, 1
      %s155 = scalar_select %p152, %s153, %s154
      %p158 = pneg %p152
      %p159 = scmp.eq.s32.totalorder %s21, 1
      %p160 = por %p158, %p159
      %p161 = scmp.ne.s32.totalorder %s153, %s156
      %p162 = scmp.eq.s32.totalorder %s21, 0
      %p163 = por %p161, %p162
      %p164 = scmp.ne.s32.totalorder %s153, %s156
      %p165 = scmp.eq.s32.totalorder %s26, 1
      %p166 = por %p164, %p165
      %p167 = scmp.ne.s32.totalorder %s156, %s157
      %p168 = scmp.eq.s32.totalorder %s26, 0
      %p169 = por %p167, %p168
      %p170 = scmp.ne.s32.totalorder %s156, %s157
      %p171 = scmp.eq.s32.totalorder %s27, 1
      %p172 = por %p170, %p171
      %p174 = scmp.ne.s32.totalorder %s157, %s173
      %p175 = scmp.eq.s32.totalorder %s27, 0
      %p176 = por %p174, %p175
      %s177 = ssub.s32 %s28, %s40
      %s178 = ssub.s32 %s29, %s36
      %s179 = sor.u32 %s177, %s178
      %p180 = scmp.eq.s32.totalorder %s179, 0
      %s182 = sadd.s32 %s181, 1
      %s183 = scalar_select %p180, %s181, %s182
      %p186 = pneg %p180
      %p187 = scmp.eq.s32.totalorder %s21, 1
      %p188 = por %p186, %p187
      %p189 = scmp.ne.s32.totalorder %s181, %s184
      %p190 = scmp.eq.s32.totalorder %s21, 0
      %p191 = por %p189, %p190
      %p192 = scmp.ne.s32.totalorder %s181, %s184
      %p193 = scmp.eq.s32.totalorder %s26, 1
      %p194 = por %p192, %p193
      %p195 = scmp.ne.s32.totalorder %s184, %s185
      %p196 = scmp.eq.s32.totalorder %s26, 0
      %p197 = por %p195, %p196
      %p198 = scmp.ne.s32.totalorder %s184, %s185
      %p199 = scmp.eq.s32.totalorder %s27, 1
      %p200 = por %p198, %p199
      %p202 = scmp.ne.s32.totalorder %s185, %s201
      %p203 = scmp.eq.s32.totalorder %s27, 0
      %p204 = por %p202, %p203
      %p205 = scmp.le.s32.totalorder 1, %s21
      %p206 = scmp.lt.s32.totalorder %s21, 3
      %p207 = pnand %p205, %p206
      %p208 = pneg %p207
      // Predicated region
      $region9: #{scaled_dot_product_attention.1} parent=5 // pred_check
        _
      $region10: #{scaled_dot_product_attention.1} parent=5 // pred_check_branch
        %210 = sbr.rel (%p207) target = $region12
      $region11: #{scaled_dot_product_attention.1} parent=5 // pred_region
        %s211 = ssub.s32 %s21, 1
      $region12: #{scaled_dot_product_attention.1} parent=5 // pred_fallthru
        _
      %p212 = scmp.lt.s32.totalorder %s21, 2
      // Predicated region
      $region13: #{scaled_dot_product_attention.1} parent=5 // pred_check
        %p213 = pneg %p212
      $region14: #{scaled_dot_product_attention.1} parent=5 // pred_check_branch
        %215 = sbr.rel (%p213) target = $region16
      $region15: #{scaled_dot_product_attention.1} parent=5 // pred_region
        // Predicated region
        $region17: #{scaled_dot_product_attention.1} parent=15 // pred_check
          %p216 = pneg %p55
        $region18: #{scaled_dot_product_attention.1} parent=15 // pred_check_branch
          %218 = sbr.rel (%p216) target = $region20
        $region19: #{scaled_dot_product_attention.1} parent=15 // pred_region
          %s219 = sand.u32 %s45, 1
          %s220 = scalar_lea.sflag [#allocation3], %s219
          %s221 = sand.u32 %s45, 1
          %s222 = smul.addr %s221, 32
          %s223 = scalar_lea.vmem [#allocation2], %s222
          %s224 = smul.u32 4, %s28
          %s226 = ssub.s32 512, 512
          %227 = vsyncadd %s220, %s226
          %s228 = sadd.s32 %s29, %s224
          %s229 = smul.addr %s228, 128
          %s230 = scalar_lea.hbm %s0, %s229
          %s231 = sshll.u32 %s223, 4
          %s232 = int_to_ptr.vmem [resolvable:$true] %s231
          %237 = dma.hbm_to_vmem [thread:$0]  %s230, 512, %s232, %s220, 128, 128, 8
        $region20: #{scaled_dot_product_attention.1} parent=15 // pred_fallthru
          _
        // Predicated region
        $region21: #{scaled_dot_product_attention.1} parent=15 // pred_check
          %p238 = pneg %p81
        $region22: #{scaled_dot_product_attention.1} parent=15 // pred_check_branch
          %240 = sbr.rel (%p238) target = $region24
        $region23: #{scaled_dot_product_attention.1} parent=15 // pred_region
          %s241 = sand.u32 %s21, 1
          %s242 = scalar_lea.sflag [#allocation6], %s241
          %s243 = sand.u32 %s71, 1
          %s244 = smul.addr %s243, 32
          %s245 = scalar_lea.vmem [#allocation5], %s244
          %s246 = smul.u32 4, %s28
          %s248 = ssub.s32 512, 512
          %249 = vsyncadd %s242, %s248
          %s250 = smul.addr %s246, 128
          %s251 = scalar_lea.hbm %s1, %s250
          %s252 = sshll.u32 %s245, 4
          %s253 = int_to_ptr.vmem [resolvable:$true] %s252
          %258 = dma.hbm_to_vmem [thread:$0]  %s251, 512, %s253, %s242, 128, 128, 8
        $region24: #{scaled_dot_product_attention.1} parent=15 // pred_fallthru
          _
        // Predicated region
        $region25: #{scaled_dot_product_attention.1} parent=15 // pred_check
          %p259 = pneg %p107
        $region26: #{scaled_dot_product_attention.1} parent=15 // pred_check_branch
          %261 = sbr.rel (%p259) target = $region28
        $region27: #{scaled_dot_product_attention.1} parent=15 // pred_region
          %s262 = sand.u32 %s21, 1
          %s263 = scalar_lea.sflag [#allocation6], %s262
          %s264 = sand.u32 %s97, 1
          %s265 = smul.addr %s264, 32
          %s266 = scalar_lea.vmem [#allocation7], %s265
          %s267 = smul.u32 4, %s28
          %s269 = ssub.s32 512, 512
          %270 = vsyncadd %s263, %s269
          %s271 = smul.addr %s267, 128
          %s272 = scalar_lea.hbm %s2, %s271
          %s273 = sshll.u32 %s266, 4
          %s274 = int_to_ptr.vmem [resolvable:$true] %s273
          %279 = dma.hbm_to_vmem [thread:$0]  %s272, 512, %s274, %s263, 128, 128, 8
        $region28: #{scaled_dot_product_attention.1} parent=15 // pred_fallthru
          _
        // Predicated region
        $region29: #{scaled_dot_product_attention.1} parent=15 // pred_check
          %p280 = pneg %p135
        $region30: #{scaled_dot_product_attention.1} parent=15 // pred_check_branch
          %282 = sbr.rel (%p280) target = $region32
        $region31: #{scaled_dot_product_attention.1} parent=15 // pred_region
          %s283 = smul.u32 4, %s28
          %p284 = scmp.lt.s32.totalorder %s283, 7
          %s285 = scalar_select %p284, %s283, 7
          %p286 = scmp.lt.s32.totalorder %s29, 0
          %s287 = scalar_select %p286, %s29, 0
          %s288 = sadd.s32 %s287, %s285
          %s289 = smul.addr %s288, 2
          %s290 = scalar_lea.vmem %s3, %s289
          %s291 = smul.u32 4, %s28
        $region32: #{scaled_dot_product_attention.1} parent=15 // pred_fallthru
          _
      $region16: #{scaled_dot_product_attention.1} parent=5 // pred_fallthru
        _
      %p292 = scmp.le.s32.totalorder 1, %s21
      %p293 = scmp.lt.s32.totalorder %s21, 3
      %p294 = pnand %p292, %p293
      %p295 = pneg %p294
      // Predicated region
      $region33: #{scaled_dot_product_attention.1} parent=5 // pred_check
        _
      $region34: #{scaled_dot_product_attention.1} parent=5 // pred_check_branch
        %297 = sbr.rel (%p294) target = $region36
      $region35: #{scaled_dot_product_attention.1} parent=5 // pred_region
        %s298 = ssub.s32 %s21, 1
        %s299 = sand.u32 %s48, 1
        %s300 = scalar_lea.sflag [#allocation3], %s299
        %s301 = sand.u32 %s48, 1
        %s302 = smul.addr %s301, 32
        %s303 = scalar_lea.vmem [#allocation2], %s302
        // Predicated region
        $region37: #{scaled_dot_product_attention.1} parent=35 // pred_check
          %p304 = pneg %p61
        $region38: #{scaled_dot_product_attention.1} parent=35 // pred_check_branch
          %306 = sbr.rel (%p304) target = $region40
        $region39: #{scaled_dot_product_attention.1} parent=35 // pred_region
          %307 = dma.done %s300, 512
        $region40: #{scaled_dot_product_attention.1} parent=35 // pred_fallthru
          _
        %s308 = sand.u32 %s26, 1
        %s309 = scalar_lea.sflag [#allocation6], %s308
        %s310 = sand.u32 %s74, 1
        %s311 = smul.addr %s310, 32
        %s312 = scalar_lea.vmem [#allocation5], %s311
        // Predicated region
        $region41: #{scaled_dot_product_attention.1} parent=35 // pred_check
          %p313 = pneg %p87
        $region42: #{scaled_dot_product_attention.1} parent=35 // pred_check_branch
          %315 = sbr.rel (%p313) target = $region44
        $region43: #{scaled_dot_product_attention.1} parent=35 // pred_region
          %316 = dma.done %s309, 512
        $region44: #{scaled_dot_product_attention.1} parent=35 // pred_fallthru
          _
        %s317 = sand.u32 %s26, 1
        %s318 = scalar_lea.sflag [#allocation6], %s317
        %s319 = sand.u32 %s100, 1
        %s320 = smul.addr %s319, 32
        %s321 = scalar_lea.vmem [#allocation7], %s320
        // Predicated region
        $region45: #{scaled_dot_product_attention.1} parent=35 // pred_check
          %p322 = pneg %p113
        $region46: #{scaled_dot_product_attention.1} parent=35 // pred_check_branch
          %324 = sbr.rel (%p322) target = $region48
        $region47: #{scaled_dot_product_attention.1} parent=35 // pred_region
          %325 = dma.done %s318, 512
        $region48: #{scaled_dot_product_attention.1} parent=35 // pred_fallthru
          _
        %s326 = sand.u32 %s48, 1
        %s327 = scalar_lea.sflag [#allocation3], %s326
        %s328 = sand.u32 %s48, 1
        %s329 = smul.addr %s328, 32
        %s330 = scalar_lea.vmem [#allocation2], %s329
        %p331 = pneg %p61
        %p332 = pneg %p58
        %s333 = sand.u32 %s26, 1
        %s334 = scalar_lea.sflag [#allocation6], %s333
        %s335 = sand.u32 %s74, 1
        %s336 = smul.addr %s335, 32
        %s337 = scalar_lea.vmem [#allocation5], %s336
        %p338 = pneg %p87
        %p339 = pneg %p84
        %s340 = sand.u32 %s26, 1
        %s341 = scalar_lea.sflag [#allocation6], %s340
        %s342 = sand.u32 %s100, 1
        %s343 = smul.addr %s342, 32
        %s344 = scalar_lea.vmem [#allocation7], %s343
        %p345 = pneg %p113
        %p346 = pneg %p110
        %s347 = smul.u32 4, %s30
        %p348 = scmp.lt.s32.totalorder %s347, 7
        %s349 = scalar_select %p348, %s347, 7
        %p350 = scmp.lt.s32.totalorder %s31, 0
        %s351 = scalar_select %p350, %s31, 0
        %s352 = sadd.s32 %s351, %s349
        %s353 = smul.addr %s352, 2
        %s354 = scalar_lea.vmem %s3, %s353
        %p355 = pneg %p141
        %p356 = pneg %p138
        %p357 = pneg %p169
        %p358 = pneg %p166
        %p359 = scmp.lt.s32.totalorder %s30, 1
        %s360 = scalar_select %p359, %s30, 1
        %p361 = scmp.lt.s32.totalorder %s31, 0
        %s362 = scalar_select %p361, %s31, 0
        %s363 = smul.addr %s362, 2
        %s364 = smul.addr %s360, 2
        %s365 = sadd.s32 %s363, %s364
        %s366 = smul.addr %s365, 8
        %s367 = scalar_lea.vmem %s4, %s366
        %p368 = pneg %p197
        %p369 = pneg %p194
        %s370 = sand.u32 %s184, 1
        %s371 = scalar_lea.sflag [#allocation4], %s370
        %s372 = sand.u32 %s184, 1
        %s373 = smul.addr %s372, 32
        %s374 = scalar_lea.vmem [#allocation8], %s373
        %s375 = smul.u32 4, %s30
        %s376 = smul.u32 4, %s30
        %s377 = smul.u32 4, %s30
        %s378 = smul.u32 4, %s30
        %p379 = scmp.lt.s32.totalorder %s378, 7
        %s380 = scalar_select %p379, %s378, 7
        %p381 = scmp.lt.s32.totalorder %s31, 0
        %s382 = scalar_select %p381, %s31, 0
        %s383 = sadd.s32 %s382, %s380
        %s384 = smul.addr %s383, 2
        %s385 = scalar_lea.vmem %s3, %s384
        %s386 = smul.u32 4, %s30
        %p387 = scmp.lt.s32.totalorder %s30, 1
        %s388 = scalar_select %p387, %s30, 1
        %p389 = scmp.lt.s32.totalorder %s31, 0
        %s390 = scalar_select %p389, %s31, 0
        %s391 = smul.addr %s390, 2
        %s392 = smul.addr %s388, 2
        %s393 = sadd.s32 %s391, %s392
        %s394 = smul.addr %s393, 8
        %s395 = scalar_lea.vmem %s4, %s394
        %s396 = smul.u32 4, %s30
        %v399 = vld [vmem:[%s303] sm:$0xff]
        %v400 = vld [vmem:[%s303 + $0x8] sm:$0xff]
        %v401 = vld [vmem:[%s303 + $0x10] sm:$0xff]
        %v402 = vld [vmem:[%s303 + $0x18] sm:$0xff]
        %v403 = vmul.f32 %v399, 0.125
        %v404 = vmul.f32 %v400, 0.125
        %v405 = vmul.f32 %v401, 0.125
        %v406 = vmul.f32 %v402, 0.125
        %v407 = vld [vmem:[%s312] sm:$0xff]
        %v408 = vld [vmem:[%s312 + $0x8] sm:$0xff]
        %v409 = vld [vmem:[%s312 + $0x10] sm:$0xff]
        %v410 = vld [vmem:[%s312 + $0x18] sm:$0xff]
        %v411 = vld [vmem:[%s321] sm:$0xff]
        %v412 = vld [vmem:[%s321 + $0x8] sm:$0xff]
        %v413 = vld [vmem:[%s321 + $0x10] sm:$0xff]
        %v414 = vld [vmem:[%s321 + $0x18] sm:$0xff]
        %vm415 = vcmask 523264
        %v417 = vsel %vm415, %v403, 0
        %v420 = vsel %vm415, %v407, 0
        %422 = vmatprep.subr.mxu0 0.0
        %423 = vmatpush1.xpose.msra.mxu0 %v420
        %424 = vmatprep.subr.mxu0 0.0
        %425 = vmatpush1.xpose.msra.mxu0 0.0
        %426 = vmatprep.subr.mxu0 0.0
        %427 = vmatpush1.xpose.msra.mxu0 0.0
        %428 = vmatprep.subr.mxu0 0.0
        %429 = vmatpush1.xpose.msra.mxu0 0.0
        %430 = vmatprep.subr.mxu0 0.0
        %431 = vmatpush1.xpose.msra.mxu0 0.0
        %432 = vmatprep.subr.mxu0 0.0
        %433 = vmatpush1.xpose.msra.mxu0 0.0
        %434 = vmatprep.subr.mxu0 0.0
        %435 = vmatpush1.xpose.msra.mxu0 0.0
        %436 = vmatprep.subr.mxu0 0.0
        %437 = vmatpush1.xpose.msra.mxu0 0.0
        %438 = vmatprep.subr.mxu0 0.0
        %439 = vmatpush1.xpose.msra.mxu0 0.0
        %440 = vmatprep.subr.mxu0 0.0
        %441 = vmatpush1.xpose.msra.mxu0 0.0
        %442 = vmatprep.subr.mxu0 0.0
        %443 = vmatpush1.xpose.msra.mxu0 0.0
        %444 = vmatprep.subr.mxu0 0.0
        %445 = vmatpush1.xpose.msra.mxu0 0.0
        %446 = vmatprep.subr.mxu0 0.0
        %447 = vmatpush1.xpose.msra.mxu0 0.0
        %448 = vmatprep.subr.mxu0 0.0
        %449 = vmatpush1.xpose.msra.mxu0 0.0
        %450 = vmatprep.subr.mxu0 0.0
        %451 = vmatpush1.xpose.msra.mxu0 0.0
        %452 = vmatprep.subr.mxu0 0.0
        %453 = vmatpush1.xpose.msra.mxu0 0.0
        %454 = vmatprep.subr.mxu0 0.0
        %455 = vmatpush1.xpose.msra.mxu0 0.0
        %456 = vmatprep.subr.mxu0 0.0
        %457 = vmatpush1.xpose.msra.mxu0 0.0
        %458 = vmatprep.subr.mxu0 0.0
        %459 = vmatpush1.xpose.msra.mxu0 0.0
        %460 = vmatprep.subr.mxu0 0.0
        %461 = vmatpush1.xpose.msra.mxu0 0.0
        %462 = vmatprep.subr.mxu0 0.0
        %463 = vmatpush1.xpose.msra.mxu0 0.0
        %464 = vmatprep.subr.mxu0 0.0
        %465 = vmatpush1.xpose.msra.mxu0 0.0
        %466 = vmatprep.subr.mxu0 0.0
        %467 = vmatpush1.xpose.msra.mxu0 0.0
        %468 = vmatprep.subr.mxu0 0.0
        %469 = vmatpush1.xpose.msra.mxu0 0.0
        %470 = vmatprep.subr.mxu0 0.0
        %471 = vmatpush1.xpose.msra.mxu0 0.0
        %472 = vmatprep.subr.mxu0 0.0
        %473 = vmatpush1.xpose.msra.mxu0 0.0
        %474 = vmatprep.subr.mxu0 0.0
        %475 = vmatpush1.xpose.msra.mxu0 0.0
        %476 = vmatprep.subr.mxu0 0.0
        %477 = vmatpush1.xpose.msra.mxu0 0.0
        %478 = vmatprep.subr.mxu0 0.0
        %479 = vmatpush1.xpose.msra.mxu0 0.0
        %480 = vmatprep.subr.mxu0 0.0
        %481 = vmatpush1.xpose.msra.mxu0 0.0
        %482 = vmatprep.subr.mxu0 0.0
        %483 = vmatpush1.xpose.msra.mxu0 0.0
        %484 = vmatprep.subr.mxu0 0.0
        %485 = vmatpush1.xpose.msra.mxu0 0.0
        %486 = vmatprep.mubr.f32.mxu0 0.0
        %487 = vmatmul.mubr.f32.gmra.mrb[0].mxu0 %v417
        %v488 = vpop.f32.mrb[0].mxu0
        %v489 = vadd.f32 0.0, %v488
        %v490 = vpop.f32.mrb[0].mxu0
        %491 = vdwg.mxu0
        %v493 = vsel %vm415, %v404, 0
        %v496 = vsel %vm415, %v408, 0
        %498 = vmatprep.subr.mxu0 0.0
        %499 = vmatpush1.xpose.msra.mxu0 %v496
        %500 = vmatprep.subr.mxu0 0.0
        %501 = vmatpush1.xpose.msra.mxu0 0.0
        %502 = vmatprep.subr.mxu0 0.0
        %503 = vmatpush1.xpose.msra.mxu0 0.0
        %504 = vmatprep.subr.mxu0 0.0
        %505 = vmatpush1.xpose.msra.mxu0 0.0
        %506 = vmatprep.subr.mxu0 0.0
        %507 = vmatpush1.xpose.msra.mxu0 0.0
        %508 = vmatprep.subr.mxu0 0.0
        %509 = vmatpush1.xpose.msra.mxu0 0.0
        %510 = vmatprep.subr.mxu0 0.0
        %511 = vmatpush1.xpose.msra.mxu0 0.0
        %512 = vmatprep.subr.mxu0 0.0
        %513 = vmatpush1.xpose.msra.mxu0 0.0
        %514 = vmatprep.subr.mxu0 0.0
        %515 = vmatpush1.xpose.msra.mxu0 0.0
        %516 = vmatprep.subr.mxu0 0.0
        %517 = vmatpush1.xpose.msra.mxu0 0.0
        %518 = vmatprep.subr.mxu0 0.0
        %519 = vmatpush1.xpose.msra.mxu0 0.0
        %520 = vmatprep.subr.mxu0 0.0
        %521 = vmatpush1.xpose.msra.mxu0 0.0
        %522 = vmatprep.subr.mxu0 0.0
        %523 = vmatpush1.xpose.msra.mxu0 0.0
        %524 = vmatprep.subr.mxu0 0.0
        %525 = vmatpush1.xpose.msra.mxu0 0.0
        %526 = vmatprep.subr.mxu0 0.0
        %527 = vmatpush1.xpose.msra.mxu0 0.0
        %528 = vmatprep.subr.mxu0 0.0
        %529 = vmatpush1.xpose.msra.mxu0 0.0
        %530 = vmatprep.subr.mxu0 0.0
        %531 = vmatpush1.xpose.msra.mxu0 0.0
        %532 = vmatprep.subr.mxu0 0.0
        %533 = vmatpush1.xpose.msra.mxu0 0.0
        %534 = vmatprep.subr.mxu0 0.0
        %535 = vmatpush1.xpose.msra.mxu0 0.0
        %536 = vmatprep.subr.mxu0 0.0
        %537 = vmatpush1.xpose.msra.mxu0 0.0
        %538 = vmatprep.subr.mxu0 0.0
        %539 = vmatpush1.xpose.msra.mxu0 0.0
        %540 = vmatprep.subr.mxu0 0.0
        %541 = vmatpush1.xpose.msra.mxu0 0.0
        %542 = vmatprep.subr.mxu0 0.0
        %543 = vmatpush1.xpose.msra.mxu0 0.0
        %544 = vmatprep.subr.mxu0 0.0
        %545 = vmatpush1.xpose.msra.mxu0 0.0
        %546 = vmatprep.subr.mxu0 0.0
        %547 = vmatpush1.xpose.msra.mxu0 0.0
        %548 = vmatprep.subr.mxu0 0.0
        %549 = vmatpush1.xpose.msra.mxu0 0.0
        %550 = vmatprep.subr.mxu0 0.0
        %551 = vmatpush1.xpose.msra.mxu0 0.0
        %552 = vmatprep.subr.mxu0 0.0
        %553 = vmatpush1.xpose.msra.mxu0 0.0
        %554 = vmatprep.subr.mxu0 0.0
        %555 = vmatpush1.xpose.msra.mxu0 0.0
        %556 = vmatprep.subr.mxu0 0.0
        %557 = vmatpush1.xpose.msra.mxu0 0.0
        %558 = vmatprep.subr.mxu0 0.0
        %559 = vmatpush1.xpose.msra.mxu0 0.0
        %560 = vmatprep.subr.mxu0 0.0
        %561 = vmatpush1.xpose.msra.mxu0 0.0
        %562 = vmatprep.mubr.f32.mxu0 0.0
        %563 = vmatmul.mubr.f32.gmra.mrb[0].mxu0 %v493
        %v564 = vpop.f32.mrb[0].mxu0
        %v565 = vadd.f32 0.0, %v564
        %v566 = vpop.f32.mrb[0].mxu0
        %567 = vdwg.mxu0
        %v569 = vsel %vm415, %v405, 0
        %v572 = vsel %vm415, %v409, 0
        %574 = vmatprep.subr.mxu0 0.0
        %575 = vmatpush1.xpose.msra.mxu0 %v572
        %576 = vmatprep.subr.mxu0 0.0
        %577 = vmatpush1.xpose.msra.mxu0 0.0
        %578 = vmatprep.subr.mxu0 0.0
        %579 = vmatpush1.xpose.msra.mxu0 0.0
        %580 = vmatprep.subr.mxu0 0.0
        %581 = vmatpush1.xpose.msra.mxu0 0.0
        %582 = vmatprep.subr.mxu0 0.0
        %583 = vmatpush1.xpose.msra.mxu0 0.0
        %584 = vmatprep.subr.mxu0 0.0
        %585 = vmatpush1.xpose.msra.mxu0 0.0
        %586 = vmatprep.subr.mxu0 0.0
        %587 = vmatpush1.xpose.msra.mxu0 0.0
        %588 = vmatprep.subr.mxu0 0.0
        %589 = vmatpush1.xpose.msra.mxu0 0.0
        %590 = vmatprep.subr.mxu0 0.0
        %591 = vmatpush1.xpose.msra.mxu0 0.0
        %592 = vmatprep.subr.mxu0 0.0
        %593 = vmatpush1.xpose.msra.mxu0 0.0
        %594 = vmatprep.subr.mxu0 0.0
        %595 = vmatpush1.xpose.msra.mxu0 0.0
        %596 = vmatprep.subr.mxu0 0.0
        %597 = vmatpush1.xpose.msra.mxu0 0.0
        %598 = vmatprep.subr.mxu0 0.0
        %599 = vmatpush1.xpose.msra.mxu0 0.0
        %600 = vmatprep.subr.mxu0 0.0
        %601 = vmatpush1.xpose.msra.mxu0 0.0
        %602 = vmatprep.subr.mxu0 0.0
        %603 = vmatpush1.xpose.msra.mxu0 0.0
        %604 = vmatprep.subr.mxu0 0.0
        %605 = vmatpush1.xpose.msra.mxu0 0.0
        %606 = vmatprep.subr.mxu0 0.0
        %607 = vmatpush1.xpose.msra.mxu0 0.0
        %608 = vmatprep.subr.mxu0 0.0
        %609 = vmatpush1.xpose.msra.mxu0 0.0
        %610 = vmatprep.subr.mxu0 0.0
        %611 = vmatpush1.xpose.msra.mxu0 0.0
        %612 = vmatprep.subr.mxu0 0.0
        %613 = vmatpush1.xpose.msra.mxu0 0.0
        %614 = vmatprep.subr.mxu0 0.0
        %615 = vmatpush1.xpose.msra.mxu0 0.0
        %616 = vmatprep.subr.mxu0 0.0
        %617 = vmatpush1.xpose.msra.mxu0 0.0
        %618 = vmatprep.subr.mxu0 0.0
        %619 = vmatpush1.xpose.msra.mxu0 0.0
        %620 = vmatprep.subr.mxu0 0.0
        %621 = vmatpush1.xpose.msra.mxu0 0.0
        %622 = vmatprep.subr.mxu0 0.0
        %623 = vmatpush1.xpose.msra.mxu0 0.0
        %624 = vmatprep.subr.mxu0 0.0
        %625 = vmatpush1.xpose.msra.mxu0 0.0
        %626 = vmatprep.subr.mxu0 0.0
        %627 = vmatpush1.xpose.msra.mxu0 0.0
        %628 = vmatprep.subr.mxu0 0.0
        %629 = vmatpush1.xpose.msra.mxu0 0.0
        %630 = vmatprep.subr.mxu0 0.0
        %631 = vmatpush1.xpose.msra.mxu0 0.0
        %632 = vmatprep.subr.mxu0 0.0
        %633 = vmatpush1.xpose.msra.mxu0 0.0
        %634 = vmatprep.subr.mxu0 0.0
        %635 = vmatpush1.xpose.msra.mxu0 0.0
        %636 = vmatprep.subr.mxu0 0.0
        %637 = vmatpush1.xpose.msra.mxu0 0.0
        %638 = vmatprep.mubr.f32.mxu0 0.0
        %639 = vmatmul.mubr.f32.gmra.mrb[0].mxu0 %v569
        %v640 = vpop.f32.mrb[0].mxu0
        %v641 = vadd.f32 0.0, %v640
        %v642 = vpop.f32.mrb[0].mxu0
        %643 = vdwg.mxu0
        %v645 = vsel %vm415, %v406, 0
        %v648 = vsel %vm415, %v410, 0
        %650 = vmatprep.subr.mxu0 0.0
        %651 = vmatpush1.xpose.msra.mxu0 %v648
        %652 = vmatprep.subr.mxu0 0.0
        %653 = vmatpush1.xpose.msra.mxu0 0.0
        %654 = vmatprep.subr.mxu0 0.0
        %655 = vmatpush1.xpose.msra.mxu0 0.0
        %656 = vmatprep.subr.mxu0 0.0
        %657 = vmatpush1.xpose.msra.mxu0 0.0
        %658 = vmatprep.subr.mxu0 0.0
        %659 = vmatpush1.xpose.msra.mxu0 0.0
        %660 = vmatprep.subr.mxu0 0.0
        %661 = vmatpush1.xpose.msra.mxu0 0.0
        %662 = vmatprep.subr.mxu0 0.0
        %663 = vmatpush1.xpose.msra.mxu0 0.0
        %664 = vmatprep.subr.mxu0 0.0
        %665 = vmatpush1.xpose.msra.mxu0 0.0
        %666 = vmatprep.subr.mxu0 0.0
        %667 = vmatpush1.xpose.msra.mxu0 0.0
        %668 = vmatprep.subr.mxu0 0.0
        %669 = vmatpush1.xpose.msra.mxu0 0.0
        %670 = vmatprep.subr.mxu0 0.0
        %671 = vmatpush1.xpose.msra.mxu0 0.0
        %672 = vmatprep.subr.mxu0 0.0
        %673 = vmatpush1.xpose.msra.mxu0 0.0
        %674 = vmatprep.subr.mxu0 0.0
        %675 = vmatpush1.xpose.msra.mxu0 0.0
        %676 = vmatprep.subr.mxu0 0.0
        %677 = vmatpush1.xpose.msra.mxu0 0.0
        %678 = vmatprep.subr.mxu0 0.0
        %679 = vmatpush1.xpose.msra.mxu0 0.0
        %680 = vmatprep.subr.mxu0 0.0
        %681 = vmatpush1.xpose.msra.mxu0 0.0
        %682 = vmatprep.subr.mxu0 0.0
        %683 = vmatpush1.xpose.msra.mxu0 0.0
        %684 = vmatprep.subr.mxu0 0.0
        %685 = vmatpush1.xpose.msra.mxu0 0.0
        %686 = vmatprep.subr.mxu0 0.0
        %687 = vmatpush1.xpose.msra.mxu0 0.0
        %688 = vmatprep.subr.mxu0 0.0
        %689 = vmatpush1.xpose.msra.mxu0 0.0
        %690 = vmatprep.subr.mxu0 0.0
        %691 = vmatpush1.xpose.msra.mxu0 0.0
        %692 = vmatprep.subr.mxu0 0.0
        %693 = vmatpush1.xpose.msra.mxu0 0.0
        %694 = vmatprep.subr.mxu0 0.0
        %695 = vmatpush1.xpose.msra.mxu0 0.0
        %696 = vmatprep.subr.mxu0 0.0
        %697 = vmatpush1.xpose.msra.mxu0 0.0
        %698 = vmatprep.subr.mxu0 0.0
        %699 = vmatpush1.xpose.msra.mxu0 0.0
        %700 = vmatprep.subr.mxu0 0.0
        %701 = vmatpush1.xpose.msra.mxu0 0.0
        %702 = vmatprep.subr.mxu0 0.0
        %703 = vmatpush1.xpose.msra.mxu0 0.0
        %704 = vmatprep.subr.mxu0 0.0
        %705 = vmatpush1.xpose.msra.mxu0 0.0
        %706 = vmatprep.subr.mxu0 0.0
        %707 = vmatpush1.xpose.msra.mxu0 0.0
        %708 = vmatprep.subr.mxu0 0.0
        %709 = vmatpush1.xpose.msra.mxu0 0.0
        %710 = vmatprep.subr.mxu0 0.0
        %711 = vmatpush1.xpose.msra.mxu0 0.0
        %712 = vmatprep.subr.mxu0 0.0
        %713 = vmatpush1.xpose.msra.mxu0 0.0
        %714 = vmatprep.mubr.f32.mxu0 0.0
        %715 = vmatmul.mubr.f32.gmra.mrb[0].mxu0 %v645
        %v716 = vpop.f32.mrb[0].mxu0
        %v717 = vadd.f32 0.0, %v716
        %v718 = vpop.f32.mrb[0].mxu0
        %719 = vdwg.mxu0
        %v720 = vld [vmem:[%s385] sm:$0x3]
        %v721 = vld [vmem:[%s385 + $0x2] sm:$0x3]
        %v722 = vld [vmem:[%s385 + $0x4] sm:$0x3]
        %v723 = vld [vmem:[%s385 + $0x6] sm:$0x3]
        %vm724 = vnez %v720
        %vm725 = vnez %v721
        %vm726 = vnez %v722
        %vm727 = vnez %v723
        %v728 = vsel %vm724, 16843009, 0
        %v729 = vsel %vm725, 16843009, 0
        %v730 = vsel %vm726, 16843009, 0
        %v731 = vsel %vm727, 16843009, 0
        %v732 = vunpack.c.0.s8 %v728
        %v733 = vunpack.c.0.s8 %v729
        %v734 = vunpack.c.0.s8 %v730
        %v735 = vunpack.c.0.s8 %v731
        %vm736 = vcmp.ne.s32.totalorder %v732, 0
        %vm737 = vcmp.ne.s32.totalorder %v733, 0
        %vm738 = vcmp.ne.s32.totalorder %v734, 0
        %vm739 = vcmp.ne.s32.totalorder %v735, 0
        %v740 = vsel %vm736, -1e+09, %v489
        %v741 = vsel %vm737, -1e+09, %v565
        %v742 = vsel %vm738, -1e+09, %v641
        %v743 = vsel %vm739, -1e+09, %v717
        %vm744 = vcmask 64512
        %v745 = vsel %vm744, %v740, -inf
        %746 = vmax.xlane.f32.xlu0 %v745
        %v747 = vpop.xlane.xlu0 %746
        %v748 = vsel %vm744, %v741, -inf
        %749 = vmax.xlane.f32.xlu0 %v748
        %v750 = vpop.xlane.xlu0 %749
        %v751 = vsel %vm744, %v742, -inf
        %752 = vmax.xlane.f32.xlu0 %v751
        %v753 = vpop.xlane.xlu0 %752
        %v754 = vsel %vm744, %v743, -inf
        %755 = vmax.xlane.f32.xlu0 %v754
        %v756 = vpop.xlane.xlu0 %755
        %v757 = vsub.f32 %v740, %v747
        %v758 = vsub.f32 %v741, %v750
        %v759 = vsub.f32 %v742, %v753
        %v760 = vsub.f32 %v743, %v756
        %v761 = vmul.f32 %v757, 1.442695
        %v762 = vpow.pop %v761
        %v763 = vmul.f32 %v758, 1.442695
        %v764 = vpow.pop %v763
        %v765 = vmul.f32 %v759, 1.442695
        %v766 = vpow.pop %v765
        %v767 = vmul.f32 %v760, 1.442695
        %v768 = vpow.pop %v767
        %v769 = vsel %vm744, %v762, 0.0
        %770 = vadd.xlane.f32.xlu0 %v769
        %v771 = vpop.xlane.xlu0 %770
        %v772 = vsel %vm744, %v764, 0.0
        %773 = vadd.xlane.f32.xlu0 %v772
        %v774 = vpop.xlane.xlu0 %773
        %v775 = vsel %vm744, %v766, 0.0
        %776 = vadd.xlane.f32.xlu0 %v775
        %v777 = vpop.xlane.xlu0 %776
        %v778 = vsel %vm744, %v768, 0.0
        %779 = vadd.xlane.f32.xlu0 %v778
        %v780 = vpop.xlane.xlu0 %779
        %v781 = vrcp.pop %v771
        %v782 = vmul.f32 %v762, %v781
        %v783 = vrcp.pop %v774
        %v784 = vmul.f32 %v764, %v783
        %v785 = vrcp.pop %v777
        %v786 = vmul.f32 %v766, %v785
        %v787 = vrcp.pop %v780
        %v788 = vmul.f32 %v768, %v787
        %789 = vst.msk [vmem:[%s374] sm:$0xff] %vm744, %v782
        %790 = vst.msk [vmem:[%s374 + $0x8] sm:$0xff] %vm744, %v784
        %791 = vst.msk [vmem:[%s374 + $0x10] sm:$0xff] %vm744, %v786
        %792 = vst.msk [vmem:[%s374 + $0x18] sm:$0xff] %vm744, %v788
        %v794 = vsel %vm744, %v782, 0
        %796 = vmatprep.subr.mxu0 0.0
        %797 = vmatpush1.msra.mxu0 %v411
        %798 = vmatprep.subr.mxu0 0.0
        %799 = vmatpush1.msra.mxu0 0.0
        %800 = vmatprep.subr.mxu0 0.0
        %801 = vmatpush1.msra.mxu0 0.0
        %802 = vmatprep.subr.mxu0 0.0
        %803 = vmatpush1.msra.mxu0 0.0
        %804 = vmatprep.subr.mxu0 0.0
        %805 = vmatpush1.msra.mxu0 0.0
        %806 = vmatprep.subr.mxu0 0.0
        %807 = vmatpush1.msra.mxu0 0.0
        %808 = vmatprep.subr.mxu0 0.0
        %809 = vmatpush1.msra.mxu0 0.0
        %810 = vmatprep.subr.mxu0 0.0
        %811 = vmatpush1.msra.mxu0 0.0
        %812 = vmatprep.subr.mxu0 0.0
        %813 = vmatpush1.msra.mxu0 0.0
        %814 = vmatprep.subr.mxu0 0.0
        %815 = vmatpush1.msra.mxu0 0.0
        %816 = vmatprep.subr.mxu0 0.0
        %817 = vmatpush1.msra.mxu0 0.0
        %818 = vmatprep.subr.mxu0 0.0
        %819 = vmatpush1.msra.mxu0 0.0
        %820 = vmatprep.subr.mxu0 0.0
        %821 = vmatpush1.msra.mxu0 0.0
        %822 = vmatprep.subr.mxu0 0.0
        %823 = vmatpush1.msra.mxu0 0.0
        %824 = vmatprep.subr.mxu0 0.0
        %825 = vmatpush1.msra.mxu0 0.0
        %826 = vmatprep.subr.mxu0 0.0
        %827 = vmatpush1.msra.mxu0 0.0
        %828 = vmatprep.subr.mxu0 0.0
        %829 = vmatpush1.msra.mxu0 0.0
        %830 = vmatprep.subr.mxu0 0.0
        %831 = vmatpush1.msra.mxu0 0.0
        %832 = vmatprep.subr.mxu0 0.0
        %833 = vmatpush1.msra.mxu0 0.0
        %834 = vmatprep.subr.mxu0 0.0
        %835 = vmatpush1.msra.mxu0 0.0
        %836 = vmatprep.subr.mxu0 0.0
        %837 = vmatpush1.msra.mxu0 0.0
        %838 = vmatprep.subr.mxu0 0.0
        %839 = vmatpush1.msra.mxu0 0.0
        %840 = vmatprep.subr.mxu0 0.0
        %841 = vmatpush1.msra.mxu0 0.0
        %842 = vmatprep.subr.mxu0 0.0
        %843 = vmatpush1.msra.mxu0 0.0
        %844 = vmatprep.subr.mxu0 0.0
        %845 = vmatpush1.msra.mxu0 0.0
        %846 = vmatprep.subr.mxu0 0.0
        %847 = vmatpush1.msra.mxu0 0.0
        %848 = vmatprep.subr.mxu0 0.0
        %849 = vmatpush1.msra.mxu0 0.0
        %850 = vmatprep.subr.mxu0 0.0
        %851 = vmatpush1.msra.mxu0 0.0
        %852 = vmatprep.subr.mxu0 0.0
        %853 = vmatpush1.msra.mxu0 0.0
        %854 = vmatprep.subr.mxu0 0.0
        %855 = vmatpush1.msra.mxu0 0.0
        %856 = vmatprep.subr.mxu0 0.0
        %857 = vmatpush1.msra.mxu0 0.0
        %858 = vmatprep.subr.mxu0 0.0
        %859 = vmatpush1.msra.mxu0 0.0
        %860 = vmatprep.mubr.f32.mxu0 0.0
        %861 = vmatmul.mubr.f32.gmra.mrb[0].mxu0 %v794
        %v862 = vpop.f32.mrb[0].mxu0
        %v863 = vadd.f32 0.0, %v862
        %v864 = vpop.f32.mrb[0].mxu0
        %865 = vdwg.mxu0
        %v867 = vsel %vm744, %v784, 0
        %869 = vmatprep.subr.mxu0 0.0
        %870 = vmatpush1.msra.mxu0 %v412
        %871 = vmatprep.subr.mxu0 0.0
        %872 = vmatpush1.msra.mxu0 0.0
        %873 = vmatprep.subr.mxu0 0.0
        %874 = vmatpush1.msra.mxu0 0.0
        %875 = vmatprep.subr.mxu0 0.0
        %876 = vmatpush1.msra.mxu0 0.0
        %877 = vmatprep.subr.mxu0 0.0
        %878 = vmatpush1.msra.mxu0 0.0
        %879 = vmatprep.subr.mxu0 0.0
        %880 = vmatpush1.msra.mxu0 0.0
        %881 = vmatprep.subr.mxu0 0.0
        %882 = vmatpush1.msra.mxu0 0.0
        %883 = vmatprep.subr.mxu0 0.0
        %884 = vmatpush1.msra.mxu0 0.0
        %885 = vmatprep.subr.mxu0 0.0
        %886 = vmatpush1.msra.mxu0 0.0
        %887 = vmatprep.subr.mxu0 0.0
        %888 = vmatpush1.msra.mxu0 0.0
        %889 = vmatprep.subr.mxu0 0.0
        %890 = vmatpush1.msra.mxu0 0.0
        %891 = vmatprep.subr.mxu0 0.0
        %892 = vmatpush1.msra.mxu0 0.0
        %893 = vmatprep.subr.mxu0 0.0
        %894 = vmatpush1.msra.mxu0 0.0
        %895 = vmatprep.subr.mxu0 0.0
        %896 = vmatpush1.msra.mxu0 0.0
        %897 = vmatprep.subr.mxu0 0.0
        %898 = vmatpush1.msra.mxu0 0.0
        %899 = vmatprep.subr.mxu0 0.0
        %900 = vmatpush1.msra.mxu0 0.0
        %901 = vmatprep.subr.mxu0 0.0
        %902 = vmatpush1.msra.mxu0 0.0
        %903 = vmatprep.subr.mxu0 0.0
        %904 = vmatpush1.msra.mxu0 0.0
        %905 = vmatprep.subr.mxu0 0.0
        %906 = vmatpush1.msra.mxu0 0.0
        %907 = vmatprep.subr.mxu0 0.0
        %908 = vmatpush1.msra.mxu0 0.0
        %909 = vmatprep.subr.mxu0 0.0
        %910 = vmatpush1.msra.mxu0 0.0
        %911 = vmatprep.subr.mxu0 0.0
        %912 = vmatpush1.msra.mxu0 0.0
        %913 = vmatprep.subr.mxu0 0.0
        %914 = vmatpush1.msra.mxu0 0.0
        %915 = vmatprep.subr.mxu0 0.0
        %916 = vmatpush1.msra.mxu0 0.0
        %917 = vmatprep.subr.mxu0 0.0
        %918 = vmatpush1.msra.mxu0 0.0
        %919 = vmatprep.subr.mxu0 0.0
        %920 = vmatpush1.msra.mxu0 0.0
        %921 = vmatprep.subr.mxu0 0.0
        %922 = vmatpush1.msra.mxu0 0.0
        %923 = vmatprep.subr.mxu0 0.0
        %924 = vmatpush1.msra.mxu0 0.0
        %925 = vmatprep.subr.mxu0 0.0
        %926 = vmatpush1.msra.mxu0 0.0
        %927 = vmatprep.subr.mxu0 0.0
        %928 = vmatpush1.msra.mxu0 0.0
        %929 = vmatprep.subr.mxu0 0.0
        %930 = vmatpush1.msra.mxu0 0.0
        %931 = vmatprep.subr.mxu0 0.0
        %932 = vmatpush1.msra.mxu0 0.0
        %933 = vmatprep.mubr.f32.mxu0 0.0
        %934 = vmatmul.mubr.f32.gmra.mrb[0].mxu0 %v867
        %v935 = vpop.f32.mrb[0].mxu0
        %v936 = vadd.f32 0.0, %v935
        %v937 = vpop.f32.mrb[0].mxu0
        %938 = vdwg.mxu0
        %v940 = vsel %vm744, %v786, 0
        %942 = vmatprep.subr.mxu0 0.0
        %943 = vmatpush1.msra.mxu0 %v413
        %944 = vmatprep.subr.mxu0 0.0
        %945 = vmatpush1.msra.mxu0 0.0
        %946 = vmatprep.subr.mxu0 0.0
        %947 = vmatpush1.msra.mxu0 0.0
        %948 = vmatprep.subr.mxu0 0.0
        %949 = vmatpush1.msra.mxu0 0.0
        %950 = vmatprep.subr.mxu0 0.0
        %951 = vmatpush1.msra.mxu0 0.0
        %952 = vmatprep.subr.mxu0 0.0
        %953 = vmatpush1.msra.mxu0 0.0
        %954 = vmatprep.subr.mxu0 0.0
        %955 = vmatpush1.msra.mxu0 0.0
        %956 = vmatprep.subr.mxu0 0.0
        %957 = vmatpush1.msra.mxu0 0.0
        %958 = vmatprep.subr.mxu0 0.0
        %959 = vmatpush1.msra.mxu0 0.0
        %960 = vmatprep.subr.mxu0 0.0
        %961 = vmatpush1.msra.mxu0 0.0
        %962 = vmatprep.subr.mxu0 0.0
        %963 = vmatpush1.msra.mxu0 0.0
        %964 = vmatprep.subr.mxu0 0.0
        %965 = vmatpush1.msra.mxu0 0.0
        %966 = vmatprep.subr.mxu0 0.0
        %967 = vmatpush1.msra.mxu0 0.0
        %968 = vmatprep.subr.mxu0 0.0
        %969 = vmatpush1.msra.mxu0 0.0
        %970 = vmatprep.subr.mxu0 0.0
        %971 = vmatpush1.msra.mxu0 0.0
        %972 = vmatprep.subr.mxu0 0.0
        %973 = vmatpush1.msra.mxu0 0.0
        %974 = vmatprep.subr.mxu0 0.0
        %975 = vmatpush1.msra.mxu0 0.0
        %976 = vmatprep.subr.mxu0 0.0
        %977 = vmatpush1.msra.mxu0 0.0
        %978 = vmatprep.subr.mxu0 0.0
        %979 = vmatpush1.msra.mxu0 0.0
        %980 = vmatprep.subr.mxu0 0.0
        %981 = vmatpush1.msra.mxu0 0.0
        %982 = vmatprep.subr.mxu0 0.0
        %983 = vmatpush1.msra.mxu0 0.0
        %984 = vmatprep.subr.mxu0 0.0
        %985 = vmatpush1.msra.mxu0 0.0
        %986 = vmatprep.subr.mxu0 0.0
        %987 = vmatpush1.msra.mxu0 0.0
        %988 = vmatprep.subr.mxu0 0.0
        %989 = vmatpush1.msra.mxu0 0.0
        %990 = vmatprep.subr.mxu0 0.0
        %991 = vmatpush1.msra.mxu0 0.0
        %992 = vmatprep.subr.mxu0 0.0
        %993 = vmatpush1.msra.mxu0 0.0
        %994 = vmatprep.subr.mxu0 0.0
        %995 = vmatpush1.msra.mxu0 0.0
        %996 = vmatprep.subr.mxu0 0.0
        %997 = vmatpush1.msra.mxu0 0.0
        %998 = vmatprep.subr.mxu0 0.0
        %999 = vmatpush1.msra.mxu0 0.0
        %1000 = vmatprep.subr.mxu0 0.0
        %1001 = vmatpush1.msra.mxu0 0.0
        %1002 = vmatprep.subr.mxu0 0.0
        %1003 = vmatpush1.msra.mxu0 0.0
        %1004 = vmatprep.subr.mxu0 0.0
        %1005 = vmatpush1.msra.mxu0 0.0
        %1006 = vmatprep.mubr.f32.mxu0 0.0
        %1007 = vmatmul.mubr.f32.gmra.mrb[0].mxu0 %v940
        %v1008 = vpop.f32.mrb[0].mxu0
        %v1009 = vadd.f32 0.0, %v1008
        %v1010 = vpop.f32.mrb[0].mxu0
        %1011 = vdwg.mxu0
        %v1013 = vsel %vm744, %v788, 0
        %1015 = vmatprep.subr.mxu0 0.0
        %1016 = vmatpush1.msra.mxu0 %v414
        %1017 = vmatprep.subr.mxu0 0.0
        %1018 = vmatpush1.msra.mxu0 0.0
        %1019 = vmatprep.subr.mxu0 0.0
        %1020 = vmatpush1.msra.mxu0 0.0
        %1021 = vmatprep.subr.mxu0 0.0
        %1022 = vmatpush1.msra.mxu0 0.0
        %1023 = vmatprep.subr.mxu0 0.0
        %1024 = vmatpush1.msra.mxu0 0.0
        %1025 = vmatprep.subr.mxu0 0.0
        %1026 = vmatpush1.msra.mxu0 0.0
        %1027 = vmatprep.subr.mxu0 0.0
        %1028 = vmatpush1.msra.mxu0 0.0
        %1029 = vmatprep.subr.mxu0 0.0
        %1030 = vmatpush1.msra.mxu0 0.0
        %1031 = vmatprep.subr.mxu0 0.0
        %1032 = vmatpush1.msra.mxu0 0.0
        %1033 = vmatprep.subr.mxu0 0.0
        %1034 = vmatpush1.msra.mxu0 0.0
        %1035 = vmatprep.subr.mxu0 0.0
        %1036 = vmatpush1.msra.mxu0 0.0
        %1037 = vmatprep.subr.mxu0 0.0
        %1038 = vmatpush1.msra.mxu0 0.0
        %1039 = vmatprep.subr.mxu0 0.0
        %1040 = vmatpush1.msra.mxu0 0.0
        %1041 = vmatprep.subr.mxu0 0.0
        %1042 = vmatpush1.msra.mxu0 0.0
        %1043 = vmatprep.subr.mxu0 0.0
        %1044 = vmatpush1.msra.mxu0 0.0
        %1045 = vmatprep.subr.mxu0 0.0
        %1046 = vmatpush1.msra.mxu0 0.0
        %1047 = vmatprep.subr.mxu0 0.0
        %1048 = vmatpush1.msra.mxu0 0.0
        %1049 = vmatprep.subr.mxu0 0.0
        %1050 = vmatpush1.msra.mxu0 0.0
        %1051 = vmatprep.subr.mxu0 0.0
        %1052 = vmatpush1.msra.mxu0 0.0
        %1053 = vmatprep.subr.mxu0 0.0
        %1054 = vmatpush1.msra.mxu0 0.0
        %1055 = vmatprep.subr.mxu0 0.0
        %1056 = vmatpush1.msra.mxu0 0.0
        %1057 = vmatprep.subr.mxu0 0.0
        %1058 = vmatpush1.msra.mxu0 0.0
        %1059 = vmatprep.subr.mxu0 0.0
        %1060 = vmatpush1.msra.mxu0 0.0
        %1061 = vmatprep.subr.mxu0 0.0
        %1062 = vmatpush1.msra.mxu0 0.0
        %1063 = vmatprep.subr.mxu0 0.0
        %1064 = vmatpush1.msra.mxu0 0.0
        %1065 = vmatprep.subr.mxu0 0.0
        %1066 = vmatpush1.msra.mxu0 0.0
        %1067 = vmatprep.subr.mxu0 0.0
        %1068 = vmatpush1.msra.mxu0 0.0
        %1069 = vmatprep.subr.mxu0 0.0
        %1070 = vmatpush1.msra.mxu0 0.0
        %1071 = vmatprep.subr.mxu0 0.0
        %1072 = vmatpush1.msra.mxu0 0.0
        %1073 = vmatprep.subr.mxu0 0.0
        %1074 = vmatpush1.msra.mxu0 0.0
        %1075 = vmatprep.subr.mxu0 0.0
        %1076 = vmatpush1.msra.mxu0 0.0
        %1077 = vmatprep.subr.mxu0 0.0
        %1078 = vmatpush1.msra.mxu0 0.0
        %1079 = vmatprep.mubr.f32.mxu0 0.0
        %1080 = vmatmul.mubr.f32.gmra.mrb[0].mxu0 %v1013
        %v1081 = vpop.f32.mrb[0].mxu0
        %v1082 = vadd.f32 0.0, %v1081
        %v1083 = vpop.f32.mrb[0].mxu0
        %1084 = vdwg.mxu0
        %1086 = vrot.lane.b32.xlu0 %v936, 64
        %v1087 = vpop.permute.xlu0 %1086
        %1090 = vrot.lane.b32.xlu0 %v1082, 64
        %v1091 = vpop.permute.xlu0 %1090
        %v1093 = vsel %vm415, %v863, %v1087
        %v1094 = vsel %vm415, %v1009, %v1091
        %1095 = vst [vmem:[%s395] sm:$0xff] %v1093
        %1096 = vst [vmem:[%s395 + $0x8] sm:$0xff] %v1094
        %p1097 = scmp.lt.s32.totalorder %s30, 1
        %s1098 = scalar_select %p1097, %s30, 1
        %p1099 = scmp.lt.s32.totalorder %s31, 0
        %s1100 = scalar_select %p1099, %s31, 0
        %s1101 = smul.addr %s1100, 2
        %s1102 = smul.addr %s1098, 2
        %s1103 = sadd.s32 %s1101, %s1102
        %s1104 = smul.addr %s1103, 8
        %s1105 = scalar_lea.vmem %s4, %s1104
        %s1106 = sand.u32 %s184, 1
        %s1107 = scalar_lea.sflag [#allocation4], %s1106
        %s1108 = sand.u32 %s184, 1
        %s1109 = smul.addr %s1108, 32
        %s1110 = scalar_lea.vmem [#allocation8], %s1109
        // Predicated region
        $region49: #{scaled_dot_product_attention.1} parent=35 // pred_check
          %p1111 = pneg %p166
        $region50: #{scaled_dot_product_attention.1} parent=35 // pred_check_branch
          %1113 = sbr.rel (%p1111) target = $region52
        $region51: #{scaled_dot_product_attention.1} parent=35 // pred_region
          _
        $region52: #{scaled_dot_product_attention.1} parent=35 // pred_fallthru
          _
        // Predicated region
        $region53: #{scaled_dot_product_attention.1} parent=35 // pred_check
          %p1114 = pneg %p194
        $region54: #{scaled_dot_product_attention.1} parent=35 // pred_check_branch
          %1116 = sbr.rel (%p1114) target = $region56
        $region55: #{scaled_dot_product_attention.1} parent=35 // pred_region
          %s1117 = smul.u32 4, %s30
          %s1119 = ssub.s32 512, 512
          %1120 = vsyncadd %s1107, %s1119
          %s1121 = sadd.s32 %s31, %s1117
          %s1122 = smul.addr %s1121, 128
          %s1123 = scalar_lea.hbm %s5, %s1122
          %s1124 = sshll.u32 %s1110, 4
          %s1125 = int_to_ptr.vmem [resolvable:$true] %s1124
          %1130 = dma.vmem_to_hbm [thread:$0]  %s1125, 512, %s1123, %s1107, 128, 128, 8
        $region56: #{scaled_dot_product_attention.1} parent=35 // pred_fallthru
          _
      $region36: #{scaled_dot_product_attention.1} parent=5 // pred_fallthru
        _
      %p1131 = scmp.le.s32.totalorder 2, %s21
      // Predicated region
      $region57: #{scaled_dot_product_attention.1} parent=5 // pred_check
        %p1132 = pneg %p1131
      $region58: #{scaled_dot_product_attention.1} parent=5 // pred_check_branch
        %1134 = sbr.rel (%p1132) target = $region60
      $region59: #{scaled_dot_product_attention.1} parent=5 // pred_region
        %s1135 = ssub.s32 %s21, 2
        // Predicated region
        $region61: #{scaled_dot_product_attention.1} parent=59 // pred_check
          %p1136 = pneg %p172
        $region62: #{scaled_dot_product_attention.1} parent=59 // pred_check_branch
          %1138 = sbr.rel (%p1136) target = $region64
        $region63: #{scaled_dot_product_attention.1} parent=59 // pred_region
          %p1139 = scmp.lt.s32.totalorder %s32, 1
          %s1140 = scalar_select %p1139, %s32, 1
          %p1141 = scmp.lt.s32.totalorder %s33, 0
          %s1142 = scalar_select %p1141, %s33, 0
          %s1143 = smul.addr %s1142, 2
          %s1144 = smul.addr %s1140, 2
          %s1145 = sadd.s32 %s1143, %s1144
          %s1146 = smul.addr %s1145, 8
          %s1147 = scalar_lea.vmem %s4, %s1146
        $region64: #{scaled_dot_product_attention.1} parent=59 // pred_fallthru
          _
        // Predicated region
        $region65: #{scaled_dot_product_attention.1} parent=59 // pred_check
          %p1148 = pneg %p200
        $region66: #{scaled_dot_product_attention.1} parent=59 // pred_check_branch
          %1150 = sbr.rel (%p1148) target = $region68
        $region67: #{scaled_dot_product_attention.1} parent=59 // pred_region
          %s1151 = sand.u32 %s185, 1
          %s1152 = scalar_lea.sflag [#allocation4], %s1151
          %s1153 = sand.u32 %s185, 1
          %s1154 = smul.addr %s1153, 32
          %s1155 = scalar_lea.vmem [#allocation8], %s1154
          %1156 = dma.done %s1152, 512
        $region68: #{scaled_dot_product_attention.1} parent=59 // pred_fallthru
          _
      $region60: #{scaled_dot_product_attention.1} parent=5 // pred_fallthru
        _
    $region6: #{scaled_dot_product_attention.1} parent=1 // loop_footer
      %s25 = sadd.s32 1, %s21
    $region7: #{scaled_dot_product_attention.1} parent=1 // loop_footer_branch
      %20 = sbr.rel target = $region3
    $region8: #{scaled_dot_product_attention.1} parent=1 // loop_exit
      _
    %1157 = vsyncpa [#allocation3], 1
    %s1158 = scalar_lea.sflag [#allocation3], 1
    %1159 = vsyncpa %s1158, 1
    %1160 = vsyncpa [#allocation6], 1
    %s1161 = scalar_lea.sflag [#allocation6], 1
    %1162 = vsyncpa %s1161, 1
    %1163 = vsyncpa [#allocation4], 1
    %s1164 = scalar_lea.sflag [#allocation4], 1
    %1165 = vsyncpa %s1164, 1

</llo_original>
